<compile_context>
chip_gen: v6e
topology: v6e:2x2x1
jax: 0.10.0
libtpu: 0.0.40
codegen_flags: <defaults>
</compile_context>

<pallas_src>
import jax
import jax.numpy as jnp
from jax.experimental import pallas as pl
from jax.experimental.pallas import tpu as pltpu


def _round_up(x, m):
    return (x + m - 1) // m * m


def _edge_score_kernel(src_ref, dst_ref, psrc_ref, pdst_ref, b1_ref, w2_ref,
                       b2_ref, out_ref):
    # src_ref, dst_ref : (1, tile_e) int32   edge endpoints, lane-dense
    # psrc_ref, pdst_ref: (H, N2)            pre-projected node tables (VMEM-resident)
    # b1_ref : (H, 1) f32                    layer-1 bias as a column
    # w2_ref : (1, H)                        layer-2 weight as a row
    # b2_ref : (1,) f32 in SMEM              layer-2 bias
    # out_ref: (1, tile_e) f32               per-edge scores, lane-dense
    n2 = psrc_ref.shape[1]
    tile_e = src_ref.shape[1]
    cdt = psrc_ref.dtype

    # One-hot MXU gather: node index on sublanes, edges on lanes -> no transposes.
    node_iota = jax.lax.broadcasted_iota(jnp.int32, (n2, tile_e), 0)
    oh_src = (node_iota == src_ref[...]).astype(cdt)          # (N2, tile_e)
    oh_dst = (node_iota == dst_ref[...]).astype(cdt)          # (N2, tile_e)

    # Layer 1 (pre-projected): z[h, e] = P_src[h, src[e]] + P_dst[h, dst[e]]
    z = (jnp.dot(psrc_ref[...], oh_src, preferred_element_type=jnp.float32) +
         jnp.dot(pdst_ref[...], oh_dst, preferred_element_type=jnp.float32))
    # Fused bias + ReLU (+ MXU-dtype cast) in a single elementwise pass.
    a = jnp.maximum(z + b1_ref[...], 0.0).astype(cdt)         # (H, tile_e)

    # Layer 2: (1, H) @ (H, tile_e) -> (1, tile_e); already lane-dense.
    s = jnp.dot(w2_ref[...], a, preferred_element_type=jnp.float32)
    out_ref[...] = (s + b2_ref[0]).astype(out_ref.dtype)


def mlp_predictor_scores(h, src, dst, w1, b1, w2, b2, *,
                         tile_e=None, compute_dtype=jnp.float32):
    """Per-edge MLP link-prediction scores (== MLPPredictor.forward).

    h:   (N, F)   node features
    src: (E,)     edge source node indices
    dst: (E,)     edge destination node indices
    w1:  (2F, F)  first linear weight stored (in, out)   [== PyTorch W1.weight.T]
    b1:  (F,)
    w2:  (F, 1)   second linear weight stored (in, out)  [== PyTorch W2.weight.T]
    b2:  (1,)
    returns: (E,) float32 scores
    """
    N, F = h.shape
    E = src.shape[0]
    assert w1.shape == (2 * F, F) and b1.shape == (F,)
    assert w2.shape == (F, 1) and b2.shape == (1,)

    cds = jnp.dtype(compute_dtype).itemsize

    # ---- Generation-aware VMEM budget (v7x: 64 MiB/TC, v5e/v6e: 128 MiB). ----
    try:
        vmem_cap = int(pltpu.get_tpu_info().vmem_capacity_bytes)
    except Exception:
        vmem_cap = 64 * 1024 * 1024          # conservative: v7x per-core VMEM
    vmem_limit = min(vmem_cap * 3 // 4, 96 * 1024 * 1024)

    # ---- Pre-project node features once (layer 1 hoisted out of the edge loop):
    #      relu(concat(hs, hd) @ W1 + b1) == relu(P_src[src] + P_dst[dst] + b1).
    h32 = h.astype(jnp.float32)
    p_src = h32 @ w1[:F].astype(jnp.float32)      # (N, F)
    p_dst = h32 @ w1[F:].astype(jnp.float32)      # (N, F)

    Hh = _round_up(F, 8)        # hidden dim lives on sublanes
    N2 = _round_up(N, 8)        # node dim: lanes of the tables / sublanes of the one-hot

    table_bytes = 2 * Hh * N2 * cds
    if table_bytes > vmem_limit // 4:
        # TODO(synk): large-N fallback (stream XLA-gathered projection tiles or
        # manual per-row DMA gather) instead of VMEM-resident node tables.
        raise ValueError(
            f"pre-projected node tables ({table_bytes} B) exceed the VMEM "
            f"residency budget ({vmem_limit // 4} B); large-N path not implemented")

    psrc_t = jnp.pad(p_src, ((0, N2 - N), (0, Hh - F))).T.astype(compute_dtype)  # (Hh, N2)
    pdst_t = jnp.pad(p_dst, ((0, N2 - N), (0, Hh - F))).T.astype(compute_dtype)  # (Hh, N2)
    b1_col = jnp.pad(b1, (0, Hh - F)).astype(jnp.float32).reshape(Hh, 1)
    w2_row = jnp.pad(w2[:, 0], (0, Hh - F)).astype(compute_dtype).reshape(1, Hh)
    b2_s = b2.reshape(1).astype(jnp.float32)

    # ---- Edge-tile size: largest that fits the VMEM budget, then shrink so the
    #      grid has >= 2 steps (pipelining + both v7x TensorCores busy). ----
    def _footprint(t):
        stream = 2 * 2 * t * 4 + 2 * t * 4                 # src/dst (double-buffered) + out
        resident = 2 * table_bytes + 2 * (Hh + 1) * 128 * 4
        temps = t * (2 * N2 * cds + Hh * 4 + Hh * cds)     # one-hots + z + a
        return stream + resident + temps + (1 << 20)       # + slack

    if tile_e is None:
        tile_e = 128
        for cand in (8192, 4096, 2048, 1024, 512, 256, 128):
            if _footprint(cand) <= vmem_limit // 2:
                tile_e = cand
                break
        while tile_e > 128 and pl.cdiv(E, tile_e) < 2:
            tile_e //= 2
    assert tile_e % 128 == 0, "tile_e must be a multiple of the 128-lane width"

    G = pl.cdiv(E, tile_e)
    if G % 2:                    # even tile count -> both v7x TCs get work
        G += 1
    E_pad = G * tile_e

    src_l = jnp.pad(src.astype(jnp.int32), (0, E_pad - E)).reshape(1, E_pad)
    dst_l = jnp.pad(dst.astype(jnp.int32), (0, E_pad - E)).reshape(1, E_pad)

    cost = pl.CostEstimate(
        flops=E_pad * (4 * N2 * Hh + 2 * Hh),          # gather matmuls + layer 2
        transcendentals=0,
        bytes_accessed=3 * E_pad * 4 + table_bytes + (2 * Hh + 2) * 4,
    )

    out = pl.pallas_call(
        _edge_score_kernel,
        out_shape=jax.ShapeDtypeStruct((1, E_pad), jnp.float32),
        grid_spec=pltpu.PrefetchScalarGridSpec(
            num_scalar_prefetch=0,
            grid=(G,),
            in_specs=[
                pl.BlockSpec((1, tile_e), lambda i: (0, i)),          # src indices
                pl.BlockSpec((1, tile_e), lambda i: (0, i)),          # dst indices
                pl.BlockSpec((Hh, N2), lambda i: (0, 0)),             # P_src^T (resident)
                pl.BlockSpec((Hh, N2), lambda i: (0, 0)),             # P_dst^T (resident)
                pl.BlockSpec((Hh, 1), lambda i: (0, 0)),              # b1 column
                pl.BlockSpec((1, Hh), lambda i: (0, 0)),              # w2 row
                pl.BlockSpec(memory_space=pltpu.MemorySpace.SMEM),    # b2 scalar
            ],
            out_specs=pl.BlockSpec((1, tile_e), lambda i: (0, i)),    # lane-dense scores
        ),
        compiler_params=pltpu.CompilerParams(
            dimension_semantics=("parallel",),   # shards edge tiles across v7x's 2 TCs
            vmem_limit_bytes=vmem_limit,         # 48 MiB on v7x, 96 MiB on v5e/v6e
        ),
        cost_estimate=cost,
    )(src_l, dst_l, psrc_t, pdst_t, b1_col, w2_row, b2_s)

    return out[0, :E]                            # drop pad, squeeze(1)


if __name__ == "__main__":
    key = jax.random.PRNGKey(0)
    k_h, k_src, k_dst, k_w1, k_b1, k_w2, k_b2 = jax.random.split(key, 7)

    h_feats = 32
    n_nodes = 64
    n_edges = 1000          # deliberately NOT a multiple of tile_e: exercises padding

    h = jax.random.normal(k_h, (n_nodes, h_feats), dtype=jnp.float32)
    src = jax.random.randint(k_src, (n_edges,), 0, n_nodes)
    dst = jax.random.randint(k_dst, (n_edges,), 0, n_nodes)

    # nn.Linear-style params, stored transposed as (in_features, out_features).
    lim1 = 1.0 / jnp.sqrt(2.0 * h_feats)
    w1 = jax.random.uniform(k_w1, (2 * h_feats, h_feats), jnp.float32, -lim1, lim1)
    b1 = jax.random.uniform(k_b1, (h_feats,), jnp.float32, -lim1, lim1)
    lim2 = 1.0 / jnp.sqrt(1.0 * h_feats)
    w2 = jax.random.uniform(k_w2, (h_feats, 1), jnp.float32, -lim2, lim2)
    b2 = jax.random.uniform(k_b2, (1,), jnp.float32, -lim2, lim2)

    def reference_f32():
        # Exact module semantics: concat -> W1 -> relu -> W2 -> squeeze.
        z = jnp.concatenate([h[src], h[dst]], axis=1) @ w1 + b1
        return (jnp.maximum(z, 0.0) @ w2 + b2)[:, 0]

    def reference_bf16():
        # Mirrors the kernel's bf16 path: bf16 tables / layer-2 operands, f32 accum.
        c = lambda a: a.astype(jnp.bfloat16).astype(jnp.float32)
        ps = c(h @ w1[:h_feats])
        pd = c(h @ w1[h_feats:])
        z = ps[src] + pd[dst] + b1
        a = jnp.maximum(z, 0.0)
        return (c(a) @ c(w2) + b2)[:, 0]

    # f32 path, auto tile selection (matches the PyTorch module's numerics).
    scores = jax.block_until_ready(
        mlp_predictor_scores(h, src, dst, w1, b1, w2, b2))
    assert scores.shape == (n_edges,)
    assert jnp.allclose(scores, reference_f32(), atol=1e-4, rtol=1e-4)

    # Explicit smaller tile: exercises a multi-step grid (G = 4).
    scores_t = jax.block_until_ready(
        mlp_predictor_scores(h, src, dst, w1, b1, w2, b2, tile_e=256))
    assert jnp.allclose(scores_t, reference_f32(), atol=1e-4, rtol=1e-4)

    # bf16 tables / MXU inputs with f32 accumulation (full-rate MXU on v5e).
    scores_bf16 = jax.block_until_ready(
        mlp_predictor_scores(h, src, dst, w1, b1, w2, b2,
                             compute_dtype=jnp.bfloat16))
    assert scores_bf16.shape == (n_edges,)
    assert jnp.allclose(scores_bf16, reference_bf16(), atol=5e-2, rtol=5e-2)

    print("KERNEL_OK")
</pallas_src>

<mosaic_0001>
module attributes {stable_mosaic.version = 11 : i64} {
  func.func @_edge_score_kernel(%arg0: i32, %arg1: memref<1x512xi32, #tpu.memory_space<vmem>>, %arg2: memref<1x512xi32, #tpu.memory_space<vmem>>, %arg3: memref<32x64xf32, #tpu.memory_space<vmem>>, %arg4: memref<32x64xf32, #tpu.memory_space<vmem>>, %arg5: memref<32x1xf32, #tpu.memory_space<vmem>>, %arg6: memref<1x32xf32, #tpu.memory_space<vmem>>, %arg7: memref<1xf32, #tpu.memory_space<smem>>, %arg8: memref<1x512xf32, #tpu.memory_space<vmem>>) attributes {dimension_semantics = [#tpu.dimension_semantics<parallel>], iteration_bounds = array<i64: 2>, scalar_prefetch = 0 : i64, scratch_operands = 0 : i64, tpu.core_type = #tpu.core_type<tc>, window_params = [{transform_indices = @transform_0, window_bounds = array<i64: 1, 512>}, {transform_indices = @transform_1, window_bounds = array<i64: 1, 512>}, {pipeline_mode = #tpu.pipeline_mode<synchronous>, transform_indices = @transform_2, window_bounds = array<i64: 32, 64>}, {pipeline_mode = #tpu.pipeline_mode<synchronous>, transform_indices = @transform_3, window_bounds = array<i64: 32, 64>}, {pipeline_mode = #tpu.pipeline_mode<synchronous>, transform_indices = @transform_4, window_bounds = array<i64: 32, 1>}, {pipeline_mode = #tpu.pipeline_mode<synchronous>, transform_indices = @transform_5, window_bounds = array<i64: 1, 32>}, {transform_indices = @transform_6, window_bounds = array<i64: 1>}, {transform_indices = @transform_7, window_bounds = array<i64: 1, 512>}]} {
    %0 = tpu.iota {dimensions = array<i32: 0>} : vector<64x512xi32>
    %c0 = arith.constant 0 : index
    %c0_0 = arith.constant 0 : index
    %1 = vector.load %arg1[%c0, %c0_0] : memref<1x512xi32, #tpu.memory_space<vmem>>, vector<1x512xi32>
    %2 = vector.broadcast %1 : vector<1x512xi32> to vector<64x512xi32>
    %3 = arith.cmpi eq, %0, %2 : vector<64x512xi32>
    %4 = arith.extui %3 : vector<64x512xi1> to vector<64x512xi32>
    %5 = arith.sitofp %4 : vector<64x512xi32> to vector<64x512xf32>
    %c0_1 = arith.constant 0 : index
    %c0_2 = arith.constant 0 : index
    %6 = vector.load %arg2[%c0_1, %c0_2] : memref<1x512xi32, #tpu.memory_space<vmem>>, vector<1x512xi32>
    %7 = vector.broadcast %6 : vector<1x512xi32> to vector<64x512xi32>
    %8 = arith.cmpi eq, %0, %7 : vector<64x512xi32>
    %9 = arith.extui %8 : vector<64x512xi1> to vector<64x512xi32>
    %10 = arith.sitofp %9 : vector<64x512xi32> to vector<64x512xf32>
    %c0_3 = arith.constant 0 : index
    %c0_4 = arith.constant 0 : index
    %11 = vector.load %arg3[%c0_3, %c0_4] : memref<32x64xf32, #tpu.memory_space<vmem>>, vector<32x64xf32>
    %cst = arith.constant dense<0.000000e+00> : vector<32x512xf32>
    %12 = tpu.matmul %11, %5, %cst {dimension_numbers = #tpu.dot_dimension_numbers<[1], [0], [0], [1], [0, 0, 1, 1], [], []>} : vector<32x64xf32>, vector<64x512xf32>, vector<32x512xf32> -> vector<32x512xf32>
    %c0_5 = arith.constant 0 : index
    %c0_6 = arith.constant 0 : index
    %13 = vector.load %arg4[%c0_5, %c0_6] : memref<32x64xf32, #tpu.memory_space<vmem>>, vector<32x64xf32>
    %cst_7 = arith.constant dense<0.000000e+00> : vector<32x512xf32>
    %14 = tpu.matmul %13, %10, %cst_7 {dimension_numbers = #tpu.dot_dimension_numbers<[1], [0], [0], [1], [0, 0, 1, 1], [], []>} : vector<32x64xf32>, vector<64x512xf32>, vector<32x512xf32> -> vector<32x512xf32>
    %15 = arith.addf %12, %14 : vector<32x512xf32>
    %c0_8 = arith.constant 0 : index
    %c0_9 = arith.constant 0 : index
    %16 = vector.load %arg5[%c0_8, %c0_9] : memref<32x1xf32, #tpu.memory_space<vmem>>, vector<32x1xf32>
    %17 = vector.broadcast %16 : vector<32x1xf32> to vector<32x512xf32>
    %18 = arith.addf %15, %17 : vector<32x512xf32>
    %cst_10 = arith.constant 0.000000e+00 : f32
    %19 = vector.broadcast %cst_10 : f32 to vector<32x512xf32>
    %20 = arith.maximumf %18, %19 : vector<32x512xf32>
    %c0_11 = arith.constant 0 : index
    %c0_12 = arith.constant 0 : index
    %21 = vector.load %arg6[%c0_11, %c0_12] : memref<1x32xf32, #tpu.memory_space<vmem>>, vector<1x32xf32>
    %cst_13 = arith.constant dense<0.000000e+00> : vector<1x512xf32>
    %22 = tpu.matmul %21, %20, %cst_13 {dimension_numbers = #tpu.dot_dimension_numbers<[1], [0], [0], [1], [0, 0, 1, 1], [], []>} : vector<1x32xf32>, vector<32x512xf32>, vector<1x512xf32> -> vector<1x512xf32>
    %c0_14 = arith.constant 0 : index
    %23 = memref.load %arg7[%c0_14] : memref<1xf32, #tpu.memory_space<smem>>
    %24 = vector.broadcast %23 : f32 to vector<1x512xf32>
    %25 = arith.addf %22, %24 : vector<1x512xf32>
    %c0_15 = arith.constant 0 : index
    %c0_16 = arith.constant 0 : index
    %26 = vector.load %arg8[%c0_15, %c0_16] : memref<1x512xf32, #tpu.memory_space<vmem>>, vector<1x512xf32>
    tpu.vector_store %arg8[%c0_15, %c0_16], %25 {strides = array<i32>} : memref<1x512xf32, #tpu.memory_space<vmem>>, vector<1x512xf32>,
    return
  }
  func.func @transform_0(%arg0: i32) -> (i32, i32) {
    %c0_i32 = arith.constant 0 : i32
    %c0_i32_0 = arith.constant 0 : i32
    return %c0_i32, %arg0 : i32, i32
  }
  func.func @transform_1(%arg0: i32) -> (i32, i32) {
    %c0_i32 = arith.constant 0 : i32
    %c0_i32_0 = arith.constant 0 : i32
    return %c0_i32, %arg0 : i32, i32
  }
  func.func @transform_2(%arg0: i32) -> (i32, i32) {
    %c0_i32 = arith.constant 0 : i32
    %c0_i32_0 = arith.constant 0 : i32
    %c0_i32_1 = arith.constant 0 : i32
    return %c0_i32, %c0_i32_0 : i32, i32
  }
  func.func @transform_3(%arg0: i32) -> (i32, i32) {
    %c0_i32 = arith.constant 0 : i32
    %c0_i32_0 = arith.constant 0 : i32
    %c0_i32_1 = arith.constant 0 : i32
    return %c0_i32, %c0_i32_0 : i32, i32
  }
  func.func @transform_4(%arg0: i32) -> (i32, i32) {
    %c0_i32 = arith.constant 0 : i32
    %c0_i32_0 = arith.constant 0 : i32
    %c0_i32_1 = arith.constant 0 : i32
    return %c0_i32, %c0_i32_0 : i32, i32
  }
  func.func @transform_5(%arg0: i32) -> (i32, i32) {
    %c0_i32 = arith.constant 0 : i32
    %c0_i32_0 = arith.constant 0 : i32
    %c0_i32_1 = arith.constant 0 : i32
    return %c0_i32, %c0_i32_0 : i32, i32
  }
  func.func @transform_6(%arg0: i32) -> i32 {
    %c0_i32 = arith.constant 0 : i32
    %c0_i32_0 = arith.constant 0 : i32
    return %c0_i32 : i32
  }
  func.func @transform_7(%arg0: i32) -> (i32, i32) {
    %c0_i32 = arith.constant 0 : i32
    %c0_i32_0 = arith.constant 0 : i32
    return %c0_i32, %arg0 : i32, i32
  }
}

</mosaic_0001>

<llo_original>
// kernel: tpu_custom_call.1
$region0: #{tpu_custom_call.1}
  #allocation0 [shape = 'u32[]', space=smem, size = 0x4, offset = 0x4, fixed_abs, tag = 'smem constant byte address 0x4 - core index']
  #allocation1 [shape = 'u32[144,128]{1,0:T(1,128)}', space=vmem, size = 0x12000, scoped, tag = 'internal scratch']
  #allocation2 [shape = 'f32[1]{0:T(128)S(6)}', space=smem, size = 0x200, scoped, tag = 'scoped memory for tpu_custom_call.1']
  %s0 = inlined_call_operand.hbm [shape: s32[1,1024], index: 0, kind: input, shape index: {}]
  %s1 = inlined_call_operand.hbm [shape: s32[1,1024], index: 1, kind: input, shape index: {}]
  %s2 = inlined_call_operand.vmem [shape: f32[32,64], index: 2, kind: input, shape index: {}]
  %s3 = inlined_call_operand.hbm [shape: f32[32,64], index: 3, kind: input, shape index: {}]
  %s4 = inlined_call_operand.vmem [shape: f32[32,1], index: 4, kind: input, shape index: {}]
  %s5 = inlined_call_operand.vmem [shape: f32[1,32], index: 5, kind: input, shape index: {}]
  %s6 = inlined_call_operand.<no memory space> [shape: f32[1], index: 6, kind: input, shape index: {}]
  %s7 = inlined_call_operand.hbm [shape: f32[1,1024], index: 7, kind: output, shape index: {}]
  %s8 = sld [smem:[#allocation0]]
  $region73: #{tpu_custom_call.1} parent=0
    _
  %s10 = ssub.s32 1, %s8
  %s11 = scalar_select 0, %s10, %s8
  %12 = sst [smem:[#allocation2]] %s6
  $region1: #{tpu_custom_call.1} parent=0
    #allocation3 [shape = 'u8[4096]{0}', space=vmem, size = 0x1000, scoped, tag = 'input window, operand 0']
    #allocation4 [shape = 's32[2]{0}', space=sflag, size = 0x8, scoped, tag = 'scoped memory for tpu_custom_call.1']
    #allocation5 [shape = 's32[2]{0}', space=sflag, size = 0x8, scoped, tag = 'scoped memory for tpu_custom_call.1']
    #allocation6 [shape = 'u8[4096]{0}', space=vmem, size = 0x1000, scoped, tag = 'input window, operand 1']
    #allocation7 [shape = 's32[2]{0}', space=sflag, size = 0x8, scoped, tag = 'scoped memory for tpu_custom_call.1']
    #allocation8 [shape = 'u8[16384]{0}', space=vmem, size = 0x4000, scoped, tag = 'input window, operand 3, single buffered']
    #allocation9 [shape = 'u8[4096]{0}', space=vmem, size = 0x1000, scoped, tag = 'output window, operand 0']
    %13 = vsyncpa [#allocation4], 0
    %s14 = scalar_lea.sflag [#allocation4], 1
    %15 = vsyncpa %s14, 0
    %16 = vsyncpa [#allocation7], 0
    %s17 = scalar_lea.sflag [#allocation7], 1
    %18 = vsyncpa %s17, 0
    %19 = vsyncpa [#allocation5], 0
    %s20 = scalar_lea.sflag [#allocation5], 1
    %21 = vsyncpa %s20, 0
    loop: start=0, step=1, limit=4
    $region2: #{tpu_custom_call.1} parent=1 // loop_pre_header
      _
    $region3: #{tpu_custom_call.1} parent=1 // loop_header
      %s23 = sphi 0, %s27
      %p24 = scmp.ge.s32.totalorder %s23, 4
      %s33 = sphi 0, %s35
      %s36 = sphi 0, %s33
      %s37 = sphi 0, %s36
      %s53 = sphi 0, %s37
      %s59 = sphi 0, %s61
      %s62 = sphi 0, %s59
      %s63 = sphi 0, %s62
      %s79 = sphi 0, %s63
      %s83 = sphi 0, %s83
      %s85 = sphi 0, %s83
      %s86 = sphi 0, %s85
      %s100 = sphi 0, %s86
      %s104 = sphi 0, %s104
      %s106 = sphi 0, %s104
      %s107 = sphi 0, %s106
      %s121 = sphi 0, %s107
      %s125 = sphi 0, %s125
      %s127 = sphi 0, %s125
      %s128 = sphi 0, %s127
      %s142 = sphi 0, %s128
      %s146 = sphi 0, %s146
      %s148 = sphi 0, %s146
      %s149 = sphi 0, %s148
      %s163 = sphi 0, %s149
      %s167 = sphi 0, %s167
      %s169 = sphi 0, %s167
      %s170 = sphi 0, %s169
      %s184 = sphi 0, %s170
      %s190 = sphi 0, %s192
      %s193 = sphi 0, %s190
      %s194 = sphi 0, %s193
      %s210 = sphi 0, %s194
    $region4: #{tpu_custom_call.1} parent=1 // loop_header_branch
      %26 = sbr.rel (%p24) target = $region8
    $region5: #{tpu_custom_call.1} parent=1 // loop_body
      %s28 = ssub.s32 %s23, 1
      %s29 = ssub.s32 %s23, 2
      %s30 = sadd.s32 %s23, 1
      %s31 = ssub.s32 %s23, %s30
      %p32 = scmp.eq.s32.totalorder %s31, 0
      %s34 = sadd.s32 %s33, 1
      %s35 = scalar_select %p32, %s33, %s34
      %p38 = pneg %p32
      %p39 = scmp.eq.s32.totalorder %s23, 1
      %p40 = por %p38, %p39
      %p41 = scmp.ne.s32.totalorder %s33, %s36
      %p42 = scmp.eq.s32.totalorder %s23, 0
      %p43 = por %p41, %p42
      %p44 = scmp.ne.s32.totalorder %s33, %s36
      %p45 = scmp.eq.s32.totalorder %s28, 1
      %p46 = por %p44, %p45
      %p47 = scmp.ne.s32.totalorder %s36, %s37
      %p48 = scmp.eq.s32.totalorder %s28, 0
      %p49 = por %p47, %p48
      %p50 = scmp.ne.s32.totalorder %s36, %s37
      %p51 = scmp.eq.s32.totalorder %s29, 1
      %p52 = por %p50, %p51
      %p54 = scmp.ne.s32.totalorder %s37, %s53
      %p55 = scmp.eq.s32.totalorder %s29, 0
      %p56 = por %p54, %p55
      %s57 = ssub.s32 %s23, %s30
      %p58 = scmp.eq.s32.totalorder %s57, 0
      %s60 = sadd.s32 %s59, 1
      %s61 = scalar_select %p58, %s59, %s60
      %p64 = pneg %p58
      %p65 = scmp.eq.s32.totalorder %s23, 1
      %p66 = por %p64, %p65
      %p67 = scmp.ne.s32.totalorder %s59, %s62
      %p68 = scmp.eq.s32.totalorder %s23, 0
      %p69 = por %p67, %p68
      %p70 = scmp.ne.s32.totalorder %s59, %s62
      %p71 = scmp.eq.s32.totalorder %s28, 1
      %p72 = por %p70, %p71
      %p73 = scmp.ne.s32.totalorder %s62, %s63
      %p74 = scmp.eq.s32.totalorder %s28, 0
      %p75 = por %p73, %p74
      %p76 = scmp.ne.s32.totalorder %s62, %s63
      %p77 = scmp.eq.s32.totalorder %s29, 1
      %p78 = por %p76, %p77
      %p80 = scmp.ne.s32.totalorder %s63, %s79
      %p81 = scmp.eq.s32.totalorder %s29, 0
      %p82 = por %p80, %p81
      %s84 = sadd.s32 %s83, 1
      %p87 = scmp.eq.s32.totalorder %s23, 1
      %p88 = scmp.ne.s32.totalorder %s83, %s85
      %p89 = scmp.eq.s32.totalorder %s23, 0
      %p90 = por %p88, %p89
      %p91 = scmp.ne.s32.totalorder %s83, %s85
      %p92 = scmp.eq.s32.totalorder %s28, 1
      %p93 = por %p91, %p92
      %p94 = scmp.ne.s32.totalorder %s85, %s86
      %p95 = scmp.eq.s32.totalorder %s28, 0
      %p96 = por %p94, %p95
      %p97 = scmp.ne.s32.totalorder %s85, %s86
      %p98 = scmp.eq.s32.totalorder %s29, 1
      %p99 = por %p97, %p98
      %p101 = scmp.ne.s32.totalorder %s86, %s100
      %p102 = scmp.eq.s32.totalorder %s29, 0
      %p103 = por %p101, %p102
      %s105 = sadd.s32 %s104, 1
      %p108 = scmp.eq.s32.totalorder %s23, 1
      %p109 = scmp.ne.s32.totalorder %s104, %s106
      %p110 = scmp.eq.s32.totalorder %s23, 0
      %p111 = por %p109, %p110
      %p112 = scmp.ne.s32.totalorder %s104, %s106
      %p113 = scmp.eq.s32.totalorder %s28, 1
      %p114 = por %p112, %p113
      %p115 = scmp.ne.s32.totalorder %s106, %s107
      %p116 = scmp.eq.s32.totalorder %s28, 0
      %p117 = por %p115, %p116
      %p118 = scmp.ne.s32.totalorder %s106, %s107
      %p119 = scmp.eq.s32.totalorder %s29, 1
      %p120 = por %p118, %p119
      %p122 = scmp.ne.s32.totalorder %s107, %s121
      %p123 = scmp.eq.s32.totalorder %s29, 0
      %p124 = por %p122, %p123
      %s126 = sadd.s32 %s125, 1
      %p129 = scmp.eq.s32.totalorder %s23, 1
      %p130 = scmp.ne.s32.totalorder %s125, %s127
      %p131 = scmp.eq.s32.totalorder %s23, 0
      %p132 = por %p130, %p131
      %p133 = scmp.ne.s32.totalorder %s125, %s127
      %p134 = scmp.eq.s32.totalorder %s28, 1
      %p135 = por %p133, %p134
      %p136 = scmp.ne.s32.totalorder %s127, %s128
      %p137 = scmp.eq.s32.totalorder %s28, 0
      %p138 = por %p136, %p137
      %p139 = scmp.ne.s32.totalorder %s127, %s128
      %p140 = scmp.eq.s32.totalorder %s29, 1
      %p141 = por %p139, %p140
      %p143 = scmp.ne.s32.totalorder %s128, %s142
      %p144 = scmp.eq.s32.totalorder %s29, 0
      %p145 = por %p143, %p144
      %s147 = sadd.s32 %s146, 1
      %p150 = scmp.eq.s32.totalorder %s23, 1
      %p151 = scmp.ne.s32.totalorder %s146, %s148
      %p152 = scmp.eq.s32.totalorder %s23, 0
      %p153 = por %p151, %p152
      %p154 = scmp.ne.s32.totalorder %s146, %s148
      %p155 = scmp.eq.s32.totalorder %s28, 1
      %p156 = por %p154, %p155
      %p157 = scmp.ne.s32.totalorder %s148, %s149
      %p158 = scmp.eq.s32.totalorder %s28, 0
      %p159 = por %p157, %p158
      %p160 = scmp.ne.s32.totalorder %s148, %s149
      %p161 = scmp.eq.s32.totalorder %s29, 1
      %p162 = por %p160, %p161
      %p164 = scmp.ne.s32.totalorder %s149, %s163
      %p165 = scmp.eq.s32.totalorder %s29, 0
      %p166 = por %p164, %p165
      %s168 = sadd.s32 %s167, 1
      %p171 = scmp.eq.s32.totalorder %s23, 1
      %p172 = scmp.ne.s32.totalorder %s167, %s169
      %p173 = scmp.eq.s32.totalorder %s23, 0
      %p174 = por %p172, %p173
      %p175 = scmp.ne.s32.totalorder %s167, %s169
      %p176 = scmp.eq.s32.totalorder %s28, 1
      %p177 = por %p175, %p176
      %p178 = scmp.ne.s32.totalorder %s169, %s170
      %p179 = scmp.eq.s32.totalorder %s28, 0
      %p180 = por %p178, %p179
      %p181 = scmp.ne.s32.totalorder %s169, %s170
      %p182 = scmp.eq.s32.totalorder %s29, 1
      %p183 = por %p181, %p182
      %p185 = scmp.ne.s32.totalorder %s170, %s184
      %p186 = scmp.eq.s32.totalorder %s29, 0
      %p187 = por %p185, %p186
      %s188 = ssub.s32 %s23, %s30
      %p189 = scmp.eq.s32.totalorder %s188, 0
      %s191 = sadd.s32 %s190, 1
      %s192 = scalar_select %p189, %s190, %s191
      %p195 = pneg %p189
      %p196 = scmp.eq.s32.totalorder %s23, 1
      %p197 = por %p195, %p196
      %p198 = scmp.ne.s32.totalorder %s190, %s193
      %p199 = scmp.eq.s32.totalorder %s23, 0
      %p200 = por %p198, %p199
      %p201 = scmp.ne.s32.totalorder %s190, %s193
      %p202 = scmp.eq.s32.totalorder %s28, 1
      %p203 = por %p201, %p202
      %p204 = scmp.ne.s32.totalorder %s193, %s194
      %p205 = scmp.eq.s32.totalorder %s28, 0
      %p206 = por %p204, %p205
      %p207 = scmp.ne.s32.totalorder %s193, %s194
      %p208 = scmp.eq.s32.totalorder %s29, 1
      %p209 = por %p207, %p208
      %p211 = scmp.ne.s32.totalorder %s194, %s210
      %p212 = scmp.eq.s32.totalorder %s29, 0
      %p213 = por %p211, %p212
      %p214 = scmp.le.s32.totalorder 1, %s23
      %p215 = scmp.lt.s32.totalorder %s23, 3
      %p216 = pnand %p214, %p215
      %p217 = pneg %p216
      // Predicated region
      $region9: #{tpu_custom_call.1} parent=5 // pred_check
        _
      $region10: #{tpu_custom_call.1} parent=5 // pred_check_branch
        %219 = sbr.rel (%p216) target = $region12
      $region11: #{tpu_custom_call.1} parent=5 // pred_region
        %s220 = ssub.s32 %s23, 1
        // Predicated region
        $region13: #{tpu_custom_call.1} parent=11 // pred_check
          %p221 = pneg %p96
        $region14: #{tpu_custom_call.1} parent=11 // pred_check_branch
          %223 = sbr.rel (%p221) target = $region16
        $region15: #{tpu_custom_call.1} parent=11 // pred_region
          _
        $region16: #{tpu_custom_call.1} parent=11 // pred_fallthru
          _
        // Predicated region
        $region17: #{tpu_custom_call.1} parent=11 // pred_check
          %p224 = pneg %p117
        $region18: #{tpu_custom_call.1} parent=11 // pred_check_branch
          %226 = sbr.rel (%p224) target = $region20
        $region19: #{tpu_custom_call.1} parent=11 // pred_region
          %s228 = ssub.s32 512, 512
          %229 = vsyncadd [#allocation7], %s228
          %s230 = sshll.u32 [#allocation8], 4
          %s231 = int_to_ptr.vmem [resolvable:$true] %s230
          %236 = dma.hbm_to_vmem [thread:$0]  %s3, 512, %s231, [#allocation7], 128, 128, 8
        $region20: #{tpu_custom_call.1} parent=11 // pred_fallthru
          _
        // Predicated region
        $region21: #{tpu_custom_call.1} parent=11 // pred_check
          %p237 = pneg %p138
        $region22: #{tpu_custom_call.1} parent=11 // pred_check_branch
          %239 = sbr.rel (%p237) target = $region24
        $region23: #{tpu_custom_call.1} parent=11 // pred_region
          _
        $region24: #{tpu_custom_call.1} parent=11 // pred_fallthru
          _
        // Predicated region
        $region25: #{tpu_custom_call.1} parent=11 // pred_check
          %p240 = pneg %p159
        $region26: #{tpu_custom_call.1} parent=11 // pred_check_branch
          %242 = sbr.rel (%p240) target = $region28
        $region27: #{tpu_custom_call.1} parent=11 // pred_region
          _
        $region28: #{tpu_custom_call.1} parent=11 // pred_fallthru
          _
        // Predicated region
        $region29: #{tpu_custom_call.1} parent=11 // pred_check
          %p243 = pneg %p180
        $region30: #{tpu_custom_call.1} parent=11 // pred_check_branch
          %245 = sbr.rel (%p243) target = $region32
        $region31: #{tpu_custom_call.1} parent=11 // pred_region
          _
        $region32: #{tpu_custom_call.1} parent=11 // pred_fallthru
          _
      $region12: #{tpu_custom_call.1} parent=5 // pred_fallthru
        _
      %p246 = scmp.lt.s32.totalorder %s23, 2
      // Predicated region
      $region33: #{tpu_custom_call.1} parent=5 // pred_check
        %p247 = pneg %p246
      $region34: #{tpu_custom_call.1} parent=5 // pred_check_branch
        %249 = sbr.rel (%p247) target = $region36
      $region35: #{tpu_custom_call.1} parent=5 // pred_region
        // Predicated region
        $region37: #{tpu_custom_call.1} parent=35 // pred_check
          %p250 = pneg %p43
        $region38: #{tpu_custom_call.1} parent=35 // pred_check_branch
          %252 = sbr.rel (%p250) target = $region40
        $region39: #{tpu_custom_call.1} parent=35 // pred_region
          %s253 = sand.u32 %s33, 1
          %s254 = scalar_lea.sflag [#allocation4], %s253
          %s255 = sand.u32 %s33, 1
          %s256 = smul.addr %s255, 4
          %s257 = scalar_lea.vmem [#allocation3], %s256
          %s258 = smul.u32 4, %s23
          %s260 = ssub.s32 64, 64
          %261 = vsyncadd %s254, %s260
          %s262 = smul.addr %s258, 16
          %s263 = scalar_lea.hbm %s0, %s262
          %s265 = sshll.u32 %s257, 4
          %s266 = int_to_ptr.vmem [resolvable:$true] %s265
          %268 = dma.hbm_to_vmem [thread:$0]  %s263, 64, %s266, %s254
        $region40: #{tpu_custom_call.1} parent=35 // pred_fallthru
          _
        // Predicated region
        $region41: #{tpu_custom_call.1} parent=35 // pred_check
          %p269 = pneg %p69
        $region42: #{tpu_custom_call.1} parent=35 // pred_check_branch
          %271 = sbr.rel (%p269) target = $region44
        $region43: #{tpu_custom_call.1} parent=35 // pred_region
          %s272 = sand.u32 %s23, 1
          %s273 = scalar_lea.sflag [#allocation7], %s272
          %s274 = sand.u32 %s59, 1
          %s275 = smul.addr %s274, 4
          %s276 = scalar_lea.vmem [#allocation6], %s275
          %s277 = smul.u32 4, %s23
          %s279 = ssub.s32 64, 64
          %280 = vsyncadd %s273, %s279
          %s281 = smul.addr %s277, 16
          %s282 = scalar_lea.hbm %s1, %s281
          %s284 = sshll.u32 %s276, 4
          %s285 = int_to_ptr.vmem [resolvable:$true] %s284
          %287 = dma.hbm_to_vmem [thread:$0]  %s282, 64, %s285, %s273
        $region44: #{tpu_custom_call.1} parent=35 // pred_fallthru
          _
      $region36: #{tpu_custom_call.1} parent=5 // pred_fallthru
        _
      %p288 = scmp.le.s32.totalorder 1, %s23
      %p289 = scmp.lt.s32.totalorder %s23, 3
      %p290 = pnand %p288, %p289
      %p291 = pneg %p290
      // Predicated region
      $region45: #{tpu_custom_call.1} parent=5 // pred_check
        _
      $region46: #{tpu_custom_call.1} parent=5 // pred_check_branch
        %293 = sbr.rel (%p290) target = $region48
      $region47: #{tpu_custom_call.1} parent=5 // pred_region
        %s294 = ssub.s32 %s23, 1
        %s295 = sand.u32 %s36, 1
        %s296 = scalar_lea.sflag [#allocation4], %s295
        %s297 = sand.u32 %s36, 1
        %s298 = smul.addr %s297, 4
        %s299 = scalar_lea.vmem [#allocation3], %s298
        // Predicated region
        $region49: #{tpu_custom_call.1} parent=47 // pred_check
          %p300 = pneg %p49
        $region50: #{tpu_custom_call.1} parent=47 // pred_check_branch
          %302 = sbr.rel (%p300) target = $region52
        $region51: #{tpu_custom_call.1} parent=47 // pred_region
          %303 = dma.done %s296, 64
        $region52: #{tpu_custom_call.1} parent=47 // pred_fallthru
          _
        %s304 = sand.u32 %s28, 1
        %s305 = scalar_lea.sflag [#allocation7], %s304
        %s306 = sand.u32 %s62, 1
        %s307 = smul.addr %s306, 4
        %s308 = scalar_lea.vmem [#allocation6], %s307
        // Predicated region
        $region53: #{tpu_custom_call.1} parent=47 // pred_check
          %p309 = pneg %p75
        $region54: #{tpu_custom_call.1} parent=47 // pred_check_branch
          %311 = sbr.rel (%p309) target = $region56
        $region55: #{tpu_custom_call.1} parent=47 // pred_region
          %312 = dma.done %s305, 64
        $region56: #{tpu_custom_call.1} parent=47 // pred_fallthru
          _
        // Predicated region
        $region57: #{tpu_custom_call.1} parent=47 // pred_check
          %p313 = pneg %p117
        $region58: #{tpu_custom_call.1} parent=47 // pred_check_branch
          %315 = sbr.rel (%p313) target = $region60
        $region59: #{tpu_custom_call.1} parent=47 // pred_region
          %316 = dma.done [#allocation7], 512
        $region60: #{tpu_custom_call.1} parent=47 // pred_fallthru
          _
        %s317 = sand.u32 %s36, 1
        %s318 = scalar_lea.sflag [#allocation4], %s317
        %s319 = sand.u32 %s36, 1
        %s320 = smul.addr %s319, 4
        %s321 = scalar_lea.vmem [#allocation3], %s320
        %p322 = pneg %p49
        %p323 = pneg %p46
        %s324 = sand.u32 %s28, 1
        %s325 = scalar_lea.sflag [#allocation7], %s324
        %s326 = sand.u32 %s62, 1
        %s327 = smul.addr %s326, 4
        %s328 = scalar_lea.vmem [#allocation6], %s327
        %p329 = pneg %p75
        %p330 = pneg %p72
        %p331 = pneg %p96
        %p332 = pneg %p93
        %p333 = pneg %p117
        %p334 = pneg %p114
        %p335 = pneg %p138
        %p336 = pneg %p135
        %p337 = pneg %p159
        %p338 = pneg %p156
        %p339 = pneg %p180
        %p340 = pneg %p177
        %p341 = pneg %p206
        %p342 = pneg %p203
        %s343 = sand.u32 %s193, 1
        %s344 = scalar_lea.sflag [#allocation5], %s343
        %s345 = sand.u32 %s193, 1
        %s346 = smul.addr %s345, 4
        %s347 = scalar_lea.vmem [#allocation9], %s346
        %s348 = smul.u32 4, %s28
        %s349 = smul.u32 4, %s28
        %s350 = smul.u32 4, %s28
        %v351 = vlaneseq
        %v352 = vshrl.u32 %v351, 7
        %v353 = vadd.s32 %v352, 8
        %v354 = vadd.s32 %v352, 16
        %v355 = vadd.s32 %v352, 24
        %v356 = vadd.s32 %v352, 32
        %v357 = vadd.s32 %v352, 40
        %v358 = vadd.s32 %v352, 48
        %v359 = vadd.s32 %v352, 56
        %v360 = vld [vmem:[%s299] sm:$0xf]
        %v361 = vlaneseq
        %v362 = vshrl.u32 %v361, 7
        %v363 = vsub.s32 0, %v362
        %v364 = vrot.slane %v360, %v363
        %v365 = vlaneseq
        %v366 = vshrl.u32 %v365, 7
        %v367 = vsub.s32 1, %v366
        %v368 = vrot.slane %v360, %v367
        %v369 = vlaneseq
        %v370 = vshrl.u32 %v369, 7
        %v371 = vsub.s32 2, %v370
        %v372 = vrot.slane %v360, %v371
        %v373 = vlaneseq
        %v374 = vshrl.u32 %v373, 7
        %v375 = vsub.s32 3, %v374
        %v376 = vrot.slane %v360, %v375
        %vm377 = vcmp.eq.s32.totalorder %v352, %v364
        %vm378 = vcmp.eq.s32.totalorder %v352, %v368
        %vm379 = vcmp.eq.s32.totalorder %v352, %v372
        %vm380 = vcmp.eq.s32.totalorder %v352, %v376
        %vm381 = vcmp.eq.s32.totalorder %v353, %v364
        %vm382 = vcmp.eq.s32.totalorder %v353, %v368
        %vm383 = vcmp.eq.s32.totalorder %v353, %v372
        %vm384 = vcmp.eq.s32.totalorder %v353, %v376
        %vm385 = vcmp.eq.s32.totalorder %v354, %v364
        %vm386 = vcmp.eq.s32.totalorder %v354, %v368
        %vm387 = vcmp.eq.s32.totalorder %v354, %v372
        %vm388 = vcmp.eq.s32.totalorder %v354, %v376
        %vm389 = vcmp.eq.s32.totalorder %v355, %v364
        %vm390 = vcmp.eq.s32.totalorder %v355, %v368
        %vm391 = vcmp.eq.s32.totalorder %v355, %v372
        %vm392 = vcmp.eq.s32.totalorder %v355, %v376
        %vm393 = vcmp.eq.s32.totalorder %v356, %v364
        %vm394 = vcmp.eq.s32.totalorder %v356, %v368
        %vm395 = vcmp.eq.s32.totalorder %v356, %v372
        %vm396 = vcmp.eq.s32.totalorder %v356, %v376
        %vm397 = vcmp.eq.s32.totalorder %v357, %v364
        %vm398 = vcmp.eq.s32.totalorder %v357, %v368
        %vm399 = vcmp.eq.s32.totalorder %v357, %v372
        %vm400 = vcmp.eq.s32.totalorder %v357, %v376
        %vm401 = vcmp.eq.s32.totalorder %v358, %v364
        %vm402 = vcmp.eq.s32.totalorder %v358, %v368
        %vm403 = vcmp.eq.s32.totalorder %v358, %v372
        %vm404 = vcmp.eq.s32.totalorder %v358, %v376
        %vm405 = vcmp.eq.s32.totalorder %v359, %v364
        %vm406 = vcmp.eq.s32.totalorder %v359, %v368
        %vm407 = vcmp.eq.s32.totalorder %v359, %v372
        %vm408 = vcmp.eq.s32.totalorder %v359, %v376
        %v409 = vsel %vm377, 1, 0
        %v410 = vsel %vm378, 1, 0
        %v411 = vsel %vm379, 1, 0
        %v412 = vsel %vm380, 1, 0
        %v413 = vsel %vm381, 1, 0
        %v414 = vsel %vm382, 1, 0
        %v415 = vsel %vm383, 1, 0
        %v416 = vsel %vm384, 1, 0
        %v417 = vsel %vm385, 1, 0
        %v418 = vsel %vm386, 1, 0
        %v419 = vsel %vm387, 1, 0
        %v420 = vsel %vm388, 1, 0
        %v421 = vsel %vm389, 1, 0
        %v422 = vsel %vm390, 1, 0
        %v423 = vsel %vm391, 1, 0
        %v424 = vsel %vm392, 1, 0
        %v425 = vsel %vm393, 1, 0
        %v426 = vsel %vm394, 1, 0
        %v427 = vsel %vm395, 1, 0
        %v428 = vsel %vm396, 1, 0
        %v429 = vsel %vm397, 1, 0
        %v430 = vsel %vm398, 1, 0
        %v431 = vsel %vm399, 1, 0
        %v432 = vsel %vm400, 1, 0
        %v433 = vsel %vm401, 1, 0
        %v434 = vsel %vm402, 1, 0
        %v435 = vsel %vm403, 1, 0
        %v436 = vsel %vm404, 1, 0
        %v437 = vsel %vm405, 1, 0
        %v438 = vsel %vm406, 1, 0
        %v439 = vsel %vm407, 1, 0
        %v440 = vsel %vm408, 1, 0
        %v441 = vcvt.s32.f32 %v409
        %v442 = vcvt.s32.f32 %v410
        %v443 = vcvt.s32.f32 %v411
        %v444 = vcvt.s32.f32 %v412
        %v445 = vcvt.s32.f32 %v413
        %v446 = vcvt.s32.f32 %v414
        %v447 = vcvt.s32.f32 %v415
        %v448 = vcvt.s32.f32 %v416
        %v449 = vcvt.s32.f32 %v417
        %v450 = vcvt.s32.f32 %v418
        %v451 = vcvt.s32.f32 %v419
        %v452 = vcvt.s32.f32 %v420
        %v453 = vcvt.s32.f32 %v421
        %v454 = vcvt.s32.f32 %v422
        %v455 = vcvt.s32.f32 %v423
        %v456 = vcvt.s32.f32 %v424
        %v457 = vcvt.s32.f32 %v425
        %v458 = vcvt.s32.f32 %v426
        %v459 = vcvt.s32.f32 %v427
        %v460 = vcvt.s32.f32 %v428
        %v461 = vcvt.s32.f32 %v429
        %v462 = vcvt.s32.f32 %v430
        %v463 = vcvt.s32.f32 %v431
        %v464 = vcvt.s32.f32 %v432
        %v465 = vcvt.s32.f32 %v433
        %v466 = vcvt.s32.f32 %v434
        %v467 = vcvt.s32.f32 %v435
        %v468 = vcvt.s32.f32 %v436
        %v469 = vcvt.s32.f32 %v437
        %v470 = vcvt.s32.f32 %v438
        %v471 = vcvt.s32.f32 %v439
        %v472 = vcvt.s32.f32 %v440
        %v473 = vld [vmem:[%s308] sm:$0xf]
        %v474 = vlaneseq
        %v475 = vshrl.u32 %v474, 7
        %v476 = vsub.s32 0, %v475
        %v477 = vrot.slane %v473, %v476
        %v478 = vlaneseq
        %v479 = vshrl.u32 %v478, 7
        %v480 = vsub.s32 1, %v479
        %v481 = vrot.slane %v473, %v480
        %v482 = vlaneseq
        %v483 = vshrl.u32 %v482, 7
        %v484 = vsub.s32 2, %v483
        %v485 = vrot.slane %v473, %v484
        %v486 = vlaneseq
        %v487 = vshrl.u32 %v486, 7
        %v488 = vsub.s32 3, %v487
        %v489 = vrot.slane %v473, %v488
        %vm490 = vcmp.eq.s32.totalorder %v352, %v477
        %vm491 = vcmp.eq.s32.totalorder %v352, %v481
        %vm492 = vcmp.eq.s32.totalorder %v352, %v485
        %vm493 = vcmp.eq.s32.totalorder %v352, %v489
        %vm494 = vcmp.eq.s32.totalorder %v353, %v477
        %vm495 = vcmp.eq.s32.totalorder %v353, %v481
        %vm496 = vcmp.eq.s32.totalorder %v353, %v485
        %vm497 = vcmp.eq.s32.totalorder %v353, %v489
        %vm498 = vcmp.eq.s32.totalorder %v354, %v477
        %vm499 = vcmp.eq.s32.totalorder %v354, %v481
        %vm500 = vcmp.eq.s32.totalorder %v354, %v485
        %vm501 = vcmp.eq.s32.totalorder %v354, %v489
        %vm502 = vcmp.eq.s32.totalorder %v355, %v477
        %vm503 = vcmp.eq.s32.totalorder %v355, %v481
        %vm504 = vcmp.eq.s32.totalorder %v355, %v485
        %vm505 = vcmp.eq.s32.totalorder %v355, %v489
        %vm506 = vcmp.eq.s32.totalorder %v356, %v477
        %vm507 = vcmp.eq.s32.totalorder %v356, %v481
        %vm508 = vcmp.eq.s32.totalorder %v356, %v485
        %vm509 = vcmp.eq.s32.totalorder %v356, %v489
        %vm510 = vcmp.eq.s32.totalorder %v357, %v477
        %vm511 = vcmp.eq.s32.totalorder %v357, %v481
        %vm512 = vcmp.eq.s32.totalorder %v357, %v485
        %vm513 = vcmp.eq.s32.totalorder %v357, %v489
        %vm514 = vcmp.eq.s32.totalorder %v358, %v477
        %vm515 = vcmp.eq.s32.totalorder %v358, %v481
        %vm516 = vcmp.eq.s32.totalorder %v358, %v485
        %vm517 = vcmp.eq.s32.totalorder %v358, %v489
        %vm518 = vcmp.eq.s32.totalorder %v359, %v477
        %vm519 = vcmp.eq.s32.totalorder %v359, %v481
        %vm520 = vcmp.eq.s32.totalorder %v359, %v485
        %vm521 = vcmp.eq.s32.totalorder %v359, %v489
        %v522 = vsel %vm490, 1, 0
        %v523 = vsel %vm491, 1, 0
        %v524 = vsel %vm492, 1, 0
        %v525 = vsel %vm493, 1, 0
        %v526 = vsel %vm494, 1, 0
        %v527 = vsel %vm495, 1, 0
        %v528 = vsel %vm496, 1, 0
        %v529 = vsel %vm497, 1, 0
        %v530 = vsel %vm498, 1, 0
        %v531 = vsel %vm499, 1, 0
        %v532 = vsel %vm500, 1, 0
        %v533 = vsel %vm501, 1, 0
        %v534 = vsel %vm502, 1, 0
        %v535 = vsel %vm503, 1, 0
        %v536 = vsel %vm504, 1, 0
        %v537 = vsel %vm505, 1, 0
        %v538 = vsel %vm506, 1, 0
        %v539 = vsel %vm507, 1, 0
        %v540 = vsel %vm508, 1, 0
        %v541 = vsel %vm509, 1, 0
        %v542 = vsel %vm510, 1, 0
        %v543 = vsel %vm511, 1, 0
        %v544 = vsel %vm512, 1, 0
        %v545 = vsel %vm513, 1, 0
        %v546 = vsel %vm514, 1, 0
        %v547 = vsel %vm515, 1, 0
        %v548 = vsel %vm516, 1, 0
        %v549 = vsel %vm517, 1, 0
        %v550 = vsel %vm518, 1, 0
        %v551 = vsel %vm519, 1, 0
        %v552 = vsel %vm520, 1, 0
        %v553 = vsel %vm521, 1, 0
        %v554 = vcvt.s32.f32 %v522
        %v555 = vcvt.s32.f32 %v523
        %v556 = vcvt.s32.f32 %v524
        %v557 = vcvt.s32.f32 %v525
        %v558 = vcvt.s32.f32 %v526
        %v559 = vcvt.s32.f32 %v527
        %v560 = vcvt.s32.f32 %v528
        %v561 = vcvt.s32.f32 %v529
        %v562 = vcvt.s32.f32 %v530
        %v563 = vcvt.s32.f32 %v531
        %v564 = vcvt.s32.f32 %v532
        %v565 = vcvt.s32.f32 %v533
        %v566 = vcvt.s32.f32 %v534
        %v567 = vcvt.s32.f32 %v535
        %v568 = vcvt.s32.f32 %v536
        %v569 = vcvt.s32.f32 %v537
        %v570 = vcvt.s32.f32 %v538
        %v571 = vcvt.s32.f32 %v539
        %v572 = vcvt.s32.f32 %v540
        %v573 = vcvt.s32.f32 %v541
        %v574 = vcvt.s32.f32 %v542
        %v575 = vcvt.s32.f32 %v543
        %v576 = vcvt.s32.f32 %v544
        %v577 = vcvt.s32.f32 %v545
        %v578 = vcvt.s32.f32 %v546
        %v579 = vcvt.s32.f32 %v547
        %v580 = vcvt.s32.f32 %v548
        %v581 = vcvt.s32.f32 %v549
        %v582 = vcvt.s32.f32 %v550
        %v583 = vcvt.s32.f32 %v551
        %v584 = vcvt.s32.f32 %v552
        %v585 = vcvt.s32.f32 %v553
        %v586 = vld [vmem:[%s2] sm:$0xff]
        %v587 = vld [vmem:[%s2 + $0x8] sm:$0xff]
        %v588 = vld [vmem:[%s2 + $0x10] sm:$0xff]
        %v589 = vld [vmem:[%s2 + $0x18] sm:$0xff]
        %v590 = vld [vmem:[#allocation8] sm:$0xff]
        %v591 = vld [vmem:[#allocation8 + $0x8] sm:$0xff]
        %v592 = vld [vmem:[#allocation8 + $0x10] sm:$0xff]
        %v593 = vld [vmem:[#allocation8 + $0x18] sm:$0xff]
        %vm594 = vcmask 523264
        %v596 = vsel %vm594, %v590, 0
        %v599 = vsel %vm594, %v591, 0
        %v602 = vsel %vm594, %v592, 0
        %v605 = vsel %vm594, %v593, 0
        %607 = vmatprep.subr.mxu0 0.0
        %608 = vmatpush1.msra.mxu0 0.0
        %609 = vmatprep.subr.mxu0 0.0
        %610 = vmatpush1.msra.mxu0 0.0
        %611 = vmatprep.subr.mxu0 0.0
        %612 = vmatpush1.msra.mxu0 0.0
        %613 = vmatprep.subr.mxu0 0.0
        %614 = vmatpush1.msra.mxu0 0.0
        %615 = vmatprep.subr.mxu0 0.0
        %616 = vmatpush1.msra.mxu0 0.0
        %617 = vmatprep.subr.mxu0 0.0
        %618 = vmatpush1.msra.mxu0 0.0
        %619 = vmatprep.subr.mxu0 0.0
        %620 = vmatpush1.msra.mxu0 0.0
        %621 = vmatprep.subr.mxu0 0.0
        %622 = vmatpush1.msra.mxu0 0.0
        %623 = vmatprep.subr.mxu0 %v583
        %624 = vmatpush1.msra.mxu0 %v582
        %625 = vmatprep.subr.mxu0 %v579
        %626 = vmatpush1.msra.mxu0 %v578
        %627 = vmatprep.subr.mxu0 %v575
        %628 = vmatpush1.msra.mxu0 %v574
        %629 = vmatprep.subr.mxu0 %v571
        %630 = vmatpush1.msra.mxu0 %v570
        %631 = vmatprep.subr.mxu0 %v567
        %632 = vmatpush1.msra.mxu0 %v566
        %633 = vmatprep.subr.mxu0 %v563
        %634 = vmatpush1.msra.mxu0 %v562
        %635 = vmatprep.subr.mxu0 %v559
        %636 = vmatpush1.msra.mxu0 %v558
        %637 = vmatprep.subr.mxu0 %v555
        %638 = vmatpush1.msra.mxu0 %v554
        %639 = vmatprep.subr.mxu0 0.0
        %640 = vmatpush2.msra.mxu0 0.0
        %641 = vmatprep.subr.mxu0 0.0
        %642 = vmatpush2.msra.mxu0 0.0
        %643 = vmatprep.subr.mxu0 0.0
        %644 = vmatpush2.msra.mxu0 0.0
        %645 = vmatprep.subr.mxu0 0.0
        %646 = vmatpush2.msra.mxu0 0.0
        %647 = vmatprep.subr.mxu0 0.0
        %648 = vmatpush2.msra.mxu0 0.0
        %649 = vmatprep.subr.mxu0 0.0
        %650 = vmatpush2.msra.mxu0 0.0
        %651 = vmatprep.subr.mxu0 0.0
        %652 = vmatpush2.msra.mxu0 0.0
        %653 = vmatprep.subr.mxu0 0.0
        %654 = vmatpush2.msra.mxu0 0.0
        %655 = vmatprep.subr.mxu0 0.0
        %656 = vmatpush2.msra.mxu0 0.0
        %657 = vmatprep.subr.mxu0 0.0
        %658 = vmatpush2.msra.mxu0 0.0
        %659 = vmatprep.subr.mxu0 0.0
        %660 = vmatpush2.msra.mxu0 0.0
        %661 = vmatprep.subr.mxu0 0.0
        %662 = vmatpush2.msra.mxu0 0.0
        %663 = vmatprep.subr.mxu0 0.0
        %664 = vmatpush2.msra.mxu0 0.0
        %665 = vmatprep.subr.mxu0 0.0
        %666 = vmatpush2.msra.mxu0 0.0
        %667 = vmatprep.subr.mxu0 0.0
        %668 = vmatpush2.msra.mxu0 0.0
        %669 = vmatprep.subr.mxu0 0.0
        %670 = vmatpush2.msra.mxu0 0.0
        %671 = vmatprep.mubr.f32.mxu0 0.0
        %672 = vmatmul.mubr.f32.gmra.mxu0 %v596
        %v673 = vpop.f32.mrf.mxu0
        %v674 = vadd.f32 0.0, %v673
        %v675 = vpop.f32.mrf.mxu0
        %v676 = vadd.f32 0.0, %v675
        %677 = vmatprep.mubr.f32.mxu0 0.0
        %678 = vmatmul.mubr.f32.gmra.mxu0 %v599
        %v679 = vpop.f32.mrf.mxu0
        %v680 = vadd.f32 0.0, %v679
        %v681 = vpop.f32.mrf.mxu0
        %v682 = vadd.f32 0.0, %v681
        %683 = vmatprep.mubr.f32.mxu0 0.0
        %684 = vmatmul.mubr.f32.gmra.mxu0 %v602
        %v685 = vpop.f32.mrf.mxu0
        %v686 = vadd.f32 0.0, %v685
        %v687 = vpop.f32.mrf.mxu0
        %v688 = vadd.f32 0.0, %v687
        %689 = vmatprep.mubr.f32.mxu0 0.0
        %690 = vmatmul.mubr.f32.gmra.mxu0 %v605
        %v691 = vpop.f32.mrf.mxu0
        %v692 = vadd.f32 0.0, %v691
        %v693 = vpop.f32.mrf.mxu0
        %v694 = vadd.f32 0.0, %v693
        %695 = vdwg.mxu0
        %696 = vmatprep.subr.mxu0 0.0
        %697 = vmatpush1.msra.mxu0 0.0
        %698 = vmatprep.subr.mxu0 0.0
        %699 = vmatpush1.msra.mxu0 0.0
        %700 = vmatprep.subr.mxu0 0.0
        %701 = vmatpush1.msra.mxu0 0.0
        %702 = vmatprep.subr.mxu0 0.0
        %703 = vmatpush1.msra.mxu0 0.0
        %704 = vmatprep.subr.mxu0 0.0
        %705 = vmatpush1.msra.mxu0 0.0
        %706 = vmatprep.subr.mxu0 0.0
        %707 = vmatpush1.msra.mxu0 0.0
        %708 = vmatprep.subr.mxu0 0.0
        %709 = vmatpush1.msra.mxu0 0.0
        %710 = vmatprep.subr.mxu0 0.0
        %711 = vmatpush1.msra.mxu0 0.0
        %712 = vmatprep.subr.mxu0 %v585
        %713 = vmatpush1.msra.mxu0 %v584
        %714 = vmatprep.subr.mxu0 %v581
        %715 = vmatpush1.msra.mxu0 %v580
        %716 = vmatprep.subr.mxu0 %v577
        %717 = vmatpush1.msra.mxu0 %v576
        %718 = vmatprep.subr.mxu0 %v573
        %719 = vmatpush1.msra.mxu0 %v572
        %720 = vmatprep.subr.mxu0 %v569
        %721 = vmatpush1.msra.mxu0 %v568
        %722 = vmatprep.subr.mxu0 %v565
        %723 = vmatpush1.msra.mxu0 %v564
        %724 = vmatprep.subr.mxu0 %v561
        %725 = vmatpush1.msra.mxu0 %v560
        %726 = vmatprep.subr.mxu0 %v557
        %727 = vmatpush1.msra.mxu0 %v556
        %728 = vmatprep.subr.mxu0 0.0
        %729 = vmatpush2.msra.mxu0 0.0
        %730 = vmatprep.subr.mxu0 0.0
        %731 = vmatpush2.msra.mxu0 0.0
        %732 = vmatprep.subr.mxu0 0.0
        %733 = vmatpush2.msra.mxu0 0.0
        %734 = vmatprep.subr.mxu0 0.0
        %735 = vmatpush2.msra.mxu0 0.0
        %736 = vmatprep.subr.mxu0 0.0
        %737 = vmatpush2.msra.mxu0 0.0
        %738 = vmatprep.subr.mxu0 0.0
        %739 = vmatpush2.msra.mxu0 0.0
        %740 = vmatprep.subr.mxu0 0.0
        %741 = vmatpush2.msra.mxu0 0.0
        %742 = vmatprep.subr.mxu0 0.0
        %743 = vmatpush2.msra.mxu0 0.0
        %744 = vmatprep.subr.mxu0 0.0
        %745 = vmatpush2.msra.mxu0 0.0
        %746 = vmatprep.subr.mxu0 0.0
        %747 = vmatpush2.msra.mxu0 0.0
        %748 = vmatprep.subr.mxu0 0.0
        %749 = vmatpush2.msra.mxu0 0.0
        %750 = vmatprep.subr.mxu0 0.0
        %751 = vmatpush2.msra.mxu0 0.0
        %752 = vmatprep.subr.mxu0 0.0
        %753 = vmatpush2.msra.mxu0 0.0
        %754 = vmatprep.subr.mxu0 0.0
        %755 = vmatpush2.msra.mxu0 0.0
        %756 = vmatprep.subr.mxu0 0.0
        %757 = vmatpush2.msra.mxu0 0.0
        %758 = vmatprep.subr.mxu0 0.0
        %759 = vmatpush2.msra.mxu0 0.0
        %760 = vmatprep.mubr.f32.mxu0 0.0
        %761 = vmatmul.mubr.f32.gmra.mxu0 %v596
        %v762 = vpop.f32.mrf.mxu0
        %v763 = vadd.f32 0.0, %v762
        %v764 = vpop.f32.mrf.mxu0
        %v765 = vadd.f32 0.0, %v764
        %766 = vmatprep.mubr.f32.mxu0 0.0
        %767 = vmatmul.mubr.f32.gmra.mxu0 %v599
        %v768 = vpop.f32.mrf.mxu0
        %v769 = vadd.f32 0.0, %v768
        %v770 = vpop.f32.mrf.mxu0
        %v771 = vadd.f32 0.0, %v770
        %772 = vmatprep.mubr.f32.mxu0 0.0
        %773 = vmatmul.mubr.f32.gmra.mxu0 %v602
        %v774 = vpop.f32.mrf.mxu0
        %v775 = vadd.f32 0.0, %v774
        %v776 = vpop.f32.mrf.mxu0
        %v777 = vadd.f32 0.0, %v776
        %778 = vmatprep.mubr.f32.mxu0 0.0
        %779 = vmatmul.mubr.f32.gmra.mxu0 %v605
        %v780 = vpop.f32.mrf.mxu0
        %v781 = vadd.f32 0.0, %v780
        %v782 = vpop.f32.mrf.mxu0
        %v783 = vadd.f32 0.0, %v782
        %784 = vdwg.mxu0
        %v786 = vsel %vm594, %v586, 0
        %v789 = vsel %vm594, %v587, 0
        %v792 = vsel %vm594, %v588, 0
        %v795 = vsel %vm594, %v589, 0
        %797 = vmatprep.subr.mxu0 0.0
        %798 = vmatpush1.msra.mxu0 0.0
        %799 = vmatprep.subr.mxu0 0.0
        %800 = vmatpush1.msra.mxu0 0.0
        %801 = vmatprep.subr.mxu0 0.0
        %802 = vmatpush1.msra.mxu0 0.0
        %803 = vmatprep.subr.mxu0 0.0
        %804 = vmatpush1.msra.mxu0 0.0
        %805 = vmatprep.subr.mxu0 0.0
        %806 = vmatpush1.msra.mxu0 0.0
        %807 = vmatprep.subr.mxu0 0.0
        %808 = vmatpush1.msra.mxu0 0.0
        %809 = vmatprep.subr.mxu0 0.0
        %810 = vmatpush1.msra.mxu0 0.0
        %811 = vmatprep.subr.mxu0 0.0
        %812 = vmatpush1.msra.mxu0 0.0
        %813 = vmatprep.subr.mxu0 %v470
        %814 = vmatpush1.msra.mxu0 %v469
        %815 = vmatprep.subr.mxu0 %v466
        %816 = vmatpush1.msra.mxu0 %v465
        %817 = vmatprep.subr.mxu0 %v462
        %818 = vmatpush1.msra.mxu0 %v461
        %819 = vmatprep.subr.mxu0 %v458
        %820 = vmatpush1.msra.mxu0 %v457
        %821 = vmatprep.subr.mxu0 %v454
        %822 = vmatpush1.msra.mxu0 %v453
        %823 = vmatprep.subr.mxu0 %v450
        %824 = vmatpush1.msra.mxu0 %v449
        %825 = vmatprep.subr.mxu0 %v446
        %826 = vmatpush1.msra.mxu0 %v445
        %827 = vmatprep.subr.mxu0 %v442
        %828 = vmatpush1.msra.mxu0 %v441
        %829 = vmatprep.subr.mxu0 0.0
        %830 = vmatpush2.msra.mxu0 0.0
        %831 = vmatprep.subr.mxu0 0.0
        %832 = vmatpush2.msra.mxu0 0.0
        %833 = vmatprep.subr.mxu0 0.0
        %834 = vmatpush2.msra.mxu0 0.0
        %835 = vmatprep.subr.mxu0 0.0
        %836 = vmatpush2.msra.mxu0 0.0
        %837 = vmatprep.subr.mxu0 0.0
        %838 = vmatpush2.msra.mxu0 0.0
        %839 = vmatprep.subr.mxu0 0.0
        %840 = vmatpush2.msra.mxu0 0.0
        %841 = vmatprep.subr.mxu0 0.0
        %842 = vmatpush2.msra.mxu0 0.0
        %843 = vmatprep.subr.mxu0 0.0
        %844 = vmatpush2.msra.mxu0 0.0
        %845 = vmatprep.subr.mxu0 0.0
        %846 = vmatpush2.msra.mxu0 0.0
        %847 = vmatprep.subr.mxu0 0.0
        %848 = vmatpush2.msra.mxu0 0.0
        %849 = vmatprep.subr.mxu0 0.0
        %850 = vmatpush2.msra.mxu0 0.0
        %851 = vmatprep.subr.mxu0 0.0
        %852 = vmatpush2.msra.mxu0 0.0
        %853 = vmatprep.subr.mxu0 0.0
        %854 = vmatpush2.msra.mxu0 0.0
        %855 = vmatprep.subr.mxu0 0.0
        %856 = vmatpush2.msra.mxu0 0.0
        %857 = vmatprep.subr.mxu0 0.0
        %858 = vmatpush2.msra.mxu0 0.0
        %859 = vmatprep.subr.mxu0 0.0
        %860 = vmatpush2.msra.mxu0 0.0
        %861 = vmatprep.mubr.f32.mxu0 0.0
        %862 = vmatmul.mubr.f32.gmra.mxu0 %v786
        %v863 = vpop.f32.mrf.mxu0
        %v864 = vadd.f32 %v674, %v863
        %v865 = vpop.f32.mrf.mxu0
        %v866 = vadd.f32 %v676, %v865
        %867 = vmatprep.mubr.f32.mxu0 0.0
        %868 = vmatmul.mubr.f32.gmra.mxu0 %v789
        %v869 = vpop.f32.mrf.mxu0
        %v870 = vadd.f32 %v680, %v869
        %v871 = vpop.f32.mrf.mxu0
        %v872 = vadd.f32 %v682, %v871
        %873 = vmatprep.mubr.f32.mxu0 0.0
        %874 = vmatmul.mubr.f32.gmra.mxu0 %v792
        %v875 = vpop.f32.mrf.mxu0
        %v876 = vadd.f32 %v686, %v875
        %v877 = vpop.f32.mrf.mxu0
        %v878 = vadd.f32 %v688, %v877
        %879 = vmatprep.mubr.f32.mxu0 0.0
        %880 = vmatmul.mubr.f32.gmra.mxu0 %v795
        %v881 = vpop.f32.mrf.mxu0
        %v882 = vadd.f32 %v692, %v881
        %v883 = vpop.f32.mrf.mxu0
        %v884 = vadd.f32 %v694, %v883
        %885 = vdwg.mxu0
        %886 = vmatprep.subr.mxu0 0.0
        %887 = vmatpush1.msra.mxu0 0.0
        %888 = vmatprep.subr.mxu0 0.0
        %889 = vmatpush1.msra.mxu0 0.0
        %890 = vmatprep.subr.mxu0 0.0
        %891 = vmatpush1.msra.mxu0 0.0
        %892 = vmatprep.subr.mxu0 0.0
        %893 = vmatpush1.msra.mxu0 0.0
        %894 = vmatprep.subr.mxu0 0.0
        %895 = vmatpush1.msra.mxu0 0.0
        %896 = vmatprep.subr.mxu0 0.0
        %897 = vmatpush1.msra.mxu0 0.0
        %898 = vmatprep.subr.mxu0 0.0
        %899 = vmatpush1.msra.mxu0 0.0
        %900 = vmatprep.subr.mxu0 0.0
        %901 = vmatpush1.msra.mxu0 0.0
        %902 = vmatprep.subr.mxu0 %v472
        %903 = vmatpush1.msra.mxu0 %v471
        %904 = vmatprep.subr.mxu0 %v468
        %905 = vmatpush1.msra.mxu0 %v467
        %906 = vmatprep.subr.mxu0 %v464
        %907 = vmatpush1.msra.mxu0 %v463
        %908 = vmatprep.subr.mxu0 %v460
        %909 = vmatpush1.msra.mxu0 %v459
        %910 = vmatprep.subr.mxu0 %v456
        %911 = vmatpush1.msra.mxu0 %v455
        %912 = vmatprep.subr.mxu0 %v452
        %913 = vmatpush1.msra.mxu0 %v451
        %914 = vmatprep.subr.mxu0 %v448
        %915 = vmatpush1.msra.mxu0 %v447
        %916 = vmatprep.subr.mxu0 %v444
        %917 = vmatpush1.msra.mxu0 %v443
        %918 = vmatprep.subr.mxu0 0.0
        %919 = vmatpush2.msra.mxu0 0.0
        %920 = vmatprep.subr.mxu0 0.0
        %921 = vmatpush2.msra.mxu0 0.0
        %922 = vmatprep.subr.mxu0 0.0
        %923 = vmatpush2.msra.mxu0 0.0
        %924 = vmatprep.subr.mxu0 0.0
        %925 = vmatpush2.msra.mxu0 0.0
        %926 = vmatprep.subr.mxu0 0.0
        %927 = vmatpush2.msra.mxu0 0.0
        %928 = vmatprep.subr.mxu0 0.0
        %929 = vmatpush2.msra.mxu0 0.0
        %930 = vmatprep.subr.mxu0 0.0
        %931 = vmatpush2.msra.mxu0 0.0
        %932 = vmatprep.subr.mxu0 0.0
        %933 = vmatpush2.msra.mxu0 0.0
        %934 = vmatprep.subr.mxu0 0.0
        %935 = vmatpush2.msra.mxu0 0.0
        %936 = vmatprep.subr.mxu0 0.0
        %937 = vmatpush2.msra.mxu0 0.0
        %938 = vmatprep.subr.mxu0 0.0
        %939 = vmatpush2.msra.mxu0 0.0
        %940 = vmatprep.subr.mxu0 0.0
        %941 = vmatpush2.msra.mxu0 0.0
        %942 = vmatprep.subr.mxu0 0.0
        %943 = vmatpush2.msra.mxu0 0.0
        %944 = vmatprep.subr.mxu0 0.0
        %945 = vmatpush2.msra.mxu0 0.0
        %946 = vmatprep.subr.mxu0 0.0
        %947 = vmatpush2.msra.mxu0 0.0
        %948 = vmatprep.subr.mxu0 0.0
        %949 = vmatpush2.msra.mxu0 0.0
        %950 = vmatprep.mubr.f32.mxu0 0.0
        %951 = vmatmul.mubr.f32.gmra.mxu0 %v786
        %v952 = vpop.f32.mrf.mxu0
        %v953 = vadd.f32 %v763, %v952
        %v954 = vpop.f32.mrf.mxu0
        %v955 = vadd.f32 %v765, %v954
        %956 = vmatprep.mubr.f32.mxu0 0.0
        %957 = vmatmul.mubr.f32.gmra.mxu0 %v789
        %v958 = vpop.f32.mrf.mxu0
        %v959 = vadd.f32 %v769, %v958
        %v960 = vpop.f32.mrf.mxu0
        %v961 = vadd.f32 %v771, %v960
        %962 = vmatprep.mubr.f32.mxu0 0.0
        %963 = vmatmul.mubr.f32.gmra.mxu0 %v792
        %v964 = vpop.f32.mrf.mxu0
        %v965 = vadd.f32 %v775, %v964
        %v966 = vpop.f32.mrf.mxu0
        %v967 = vadd.f32 %v777, %v966
        %968 = vmatprep.mubr.f32.mxu0 0.0
        %969 = vmatmul.mubr.f32.gmra.mxu0 %v795
        %v970 = vpop.f32.mrf.mxu0
        %v971 = vadd.f32 %v781, %v970
        %v972 = vpop.f32.mrf.mxu0
        %v973 = vadd.f32 %v783, %v972
        %974 = vdwg.mxu0
        %v975 = vld [vmem:[%s4] sm:$0xff]
        %v976 = vld [vmem:[%s4 + $0x8] sm:$0xff]
        %v977 = vld [vmem:[%s4 + $0x10] sm:$0xff]
        %v978 = vld [vmem:[%s4 + $0x18] sm:$0xff]
        %980 = vset.pattern.permute.xlu0 0
        %981 = vperm.xlu0 %980, %v975
        %v982 = vpop.permute.xlu0 %981
        %985 = vset.pattern.permute.xlu0 0
        %986 = vperm.xlu0 %985, %v976
        %v987 = vpop.permute.xlu0 %986
        %990 = vset.pattern.permute.xlu0 0
        %991 = vperm.xlu0 %990, %v977
        %v992 = vpop.permute.xlu0 %991
        %995 = vset.pattern.permute.xlu0 0
        %996 = vperm.xlu0 %995, %v978
        %v997 = vpop.permute.xlu0 %996
        %v999 = vadd.f32 %v864, %v982
        %v1000 = vadd.f32 %v866, %v982
        %v1001 = vadd.f32 %v953, %v982
        %v1002 = vadd.f32 %v955, %v982
        %v1003 = vadd.f32 %v870, %v987
        %v1004 = vadd.f32 %v872, %v987
        %v1005 = vadd.f32 %v959, %v987
        %v1006 = vadd.f32 %v961, %v987
        %v1007 = vadd.f32 %v876, %v992
        %v1008 = vadd.f32 %v878, %v992
        %v1009 = vadd.f32 %v965, %v992
        %v1010 = vadd.f32 %v967, %v992
        %v1011 = vadd.f32 %v882, %v997
        %v1012 = vadd.f32 %v884, %v997
        %v1013 = vadd.f32 %v971, %v997
        %v1014 = vadd.f32 %v973, %v997
        %v1015 = vmax.f32 %v999, 0.0
        %v1016 = vmax.f32 %v1000, 0.0
        %v1017 = vmax.f32 %v1001, 0.0
        %v1018 = vmax.f32 %v1002, 0.0
        %v1019 = vmax.f32 %v1003, 0.0
        %v1020 = vmax.f32 %v1004, 0.0
        %v1021 = vmax.f32 %v1005, 0.0
        %v1022 = vmax.f32 %v1006, 0.0
        %v1023 = vmax.f32 %v1007, 0.0
        %v1024 = vmax.f32 %v1008, 0.0
        %v1025 = vmax.f32 %v1009, 0.0
        %v1026 = vmax.f32 %v1010, 0.0
        %v1027 = vmax.f32 %v1011, 0.0
        %v1028 = vmax.f32 %v1012, 0.0
        %v1029 = vmax.f32 %v1013, 0.0
        %v1030 = vmax.f32 %v1014, 0.0
        %v1031 = vld [vmem:[%s5] sm:$0x1]
        %s1032 = sld [smem:[#allocation2]]
        %v1033 = vstv %s1032
        %vm1034 = vcmask 261120
        %v1036 = vsel %vm1034, %v1031, 0
        %1038 = vmatprep.subr.mxu0 0.0
        %1039 = vmatpush1.msra.mxu0 0.0
        %1040 = vmatprep.subr.mxu0 0.0
        %1041 = vmatpush1.msra.mxu0 0.0
        %1042 = vmatprep.subr.mxu0 0.0
        %1043 = vmatpush1.msra.mxu0 0.0
        %1044 = vmatprep.subr.mxu0 0.0
        %1045 = vmatpush1.msra.mxu0 0.0
        %1046 = vmatprep.subr.mxu0 0.0
        %1047 = vmatpush1.msra.mxu0 0.0
        %1048 = vmatprep.subr.mxu0 0.0
        %1049 = vmatpush1.msra.mxu0 0.0
        %1050 = vmatprep.subr.mxu0 0.0
        %1051 = vmatpush1.msra.mxu0 0.0
        %1052 = vmatprep.subr.mxu0 0.0
        %1053 = vmatpush1.msra.mxu0 0.0
        %1054 = vmatprep.subr.mxu0 0.0
        %1055 = vmatpush1.msra.mxu0 0.0
        %1056 = vmatprep.subr.mxu0 0.0
        %1057 = vmatpush1.msra.mxu0 0.0
        %1058 = vmatprep.subr.mxu0 0.0
        %1059 = vmatpush1.msra.mxu0 0.0
        %1060 = vmatprep.subr.mxu0 0.0
        %1061 = vmatpush1.msra.mxu0 0.0
        %1062 = vmatprep.subr.mxu0 %v1028
        %1063 = vmatpush1.msra.mxu0 %v1027
        %1064 = vmatprep.subr.mxu0 %v1024
        %1065 = vmatpush1.msra.mxu0 %v1023
        %1066 = vmatprep.subr.mxu0 %v1020
        %1067 = vmatpush1.msra.mxu0 %v1019
        %1068 = vmatprep.subr.mxu0 %v1016
        %1069 = vmatpush1.msra.mxu0 %v1015
        %1070 = vmatprep.subr.mxu0 0.0
        %1071 = vmatpush2.msra.mxu0 0.0
        %1072 = vmatprep.subr.mxu0 0.0
        %1073 = vmatpush2.msra.mxu0 0.0
        %1074 = vmatprep.subr.mxu0 0.0
        %1075 = vmatpush2.msra.mxu0 0.0
        %1076 = vmatprep.subr.mxu0 0.0
        %1077 = vmatpush2.msra.mxu0 0.0
        %1078 = vmatprep.subr.mxu0 0.0
        %1079 = vmatpush2.msra.mxu0 0.0
        %1080 = vmatprep.subr.mxu0 0.0
        %1081 = vmatpush2.msra.mxu0 0.0
        %1082 = vmatprep.subr.mxu0 0.0
        %1083 = vmatpush2.msra.mxu0 0.0
        %1084 = vmatprep.subr.mxu0 0.0
        %1085 = vmatpush2.msra.mxu0 0.0
        %1086 = vmatprep.subr.mxu0 0.0
        %1087 = vmatpush2.msra.mxu0 0.0
        %1088 = vmatprep.subr.mxu0 0.0
        %1089 = vmatpush2.msra.mxu0 0.0
        %1090 = vmatprep.subr.mxu0 0.0
        %1091 = vmatpush2.msra.mxu0 0.0
        %1092 = vmatprep.subr.mxu0 0.0
        %1093 = vmatpush2.msra.mxu0 0.0
        %1094 = vmatprep.subr.mxu0 0.0
        %1095 = vmatpush2.msra.mxu0 0.0
        %1096 = vmatprep.subr.mxu0 0.0
        %1097 = vmatpush2.msra.mxu0 0.0
        %1098 = vmatprep.subr.mxu0 0.0
        %1099 = vmatpush2.msra.mxu0 0.0
        %1100 = vmatprep.subr.mxu0 0.0
        %1101 = vmatpush2.msra.mxu0 0.0
        %1102 = vmatprep.mubr.f32.mxu0 0.0
        %1103 = vmatmul.mubr.f32.gmra.mxu0 %v1036
        %v1104 = vpop.f32.mrf.mxu0
        %v1105 = vadd.f32 %v1033, %v1104
        %v1106 = vpop.f32.mrf.mxu0
        %v1107 = vadd.f32 %v1033, %v1106
        %1108 = vdwg.mxu0
        %1109 = vmatprep.subr.mxu0 0.0
        %1110 = vmatpush1.msra.mxu0 0.0
        %1111 = vmatprep.subr.mxu0 0.0
        %1112 = vmatpush1.msra.mxu0 0.0
        %1113 = vmatprep.subr.mxu0 0.0
        %1114 = vmatpush1.msra.mxu0 0.0
        %1115 = vmatprep.subr.mxu0 0.0
        %1116 = vmatpush1.msra.mxu0 0.0
        %1117 = vmatprep.subr.mxu0 0.0
        %1118 = vmatpush1.msra.mxu0 0.0
        %1119 = vmatprep.subr.mxu0 0.0
        %1120 = vmatpush1.msra.mxu0 0.0
        %1121 = vmatprep.subr.mxu0 0.0
        %1122 = vmatpush1.msra.mxu0 0.0
        %1123 = vmatprep.subr.mxu0 0.0
        %1124 = vmatpush1.msra.mxu0 0.0
        %1125 = vmatprep.subr.mxu0 0.0
        %1126 = vmatpush1.msra.mxu0 0.0
        %1127 = vmatprep.subr.mxu0 0.0
        %1128 = vmatpush1.msra.mxu0 0.0
        %1129 = vmatprep.subr.mxu0 0.0
        %1130 = vmatpush1.msra.mxu0 0.0
        %1131 = vmatprep.subr.mxu0 0.0
        %1132 = vmatpush1.msra.mxu0 0.0
        %1133 = vmatprep.subr.mxu0 %v1030
        %1134 = vmatpush1.msra.mxu0 %v1029
        %1135 = vmatprep.subr.mxu0 %v1026
        %1136 = vmatpush1.msra.mxu0 %v1025
        %1137 = vmatprep.subr.mxu0 %v1022
        %1138 = vmatpush1.msra.mxu0 %v1021
        %1139 = vmatprep.subr.mxu0 %v1018
        %1140 = vmatpush1.msra.mxu0 %v1017
        %1141 = vmatprep.subr.mxu0 0.0
        %1142 = vmatpush2.msra.mxu0 0.0
        %1143 = vmatprep.subr.mxu0 0.0
        %1144 = vmatpush2.msra.mxu0 0.0
        %1145 = vmatprep.subr.mxu0 0.0
        %1146 = vmatpush2.msra.mxu0 0.0
        %1147 = vmatprep.subr.mxu0 0.0
        %1148 = vmatpush2.msra.mxu0 0.0
        %1149 = vmatprep.subr.mxu0 0.0
        %1150 = vmatpush2.msra.mxu0 0.0
        %1151 = vmatprep.subr.mxu0 0.0
        %1152 = vmatpush2.msra.mxu0 0.0
        %1153 = vmatprep.subr.mxu0 0.0
        %1154 = vmatpush2.msra.mxu0 0.0
        %1155 = vmatprep.subr.mxu0 0.0
        %1156 = vmatpush2.msra.mxu0 0.0
        %1157 = vmatprep.subr.mxu0 0.0
        %1158 = vmatpush2.msra.mxu0 0.0
        %1159 = vmatprep.subr.mxu0 0.0
        %1160 = vmatpush2.msra.mxu0 0.0
        %1161 = vmatprep.subr.mxu0 0.0
        %1162 = vmatpush2.msra.mxu0 0.0
        %1163 = vmatprep.subr.mxu0 0.0
        %1164 = vmatpush2.msra.mxu0 0.0
        %1165 = vmatprep.subr.mxu0 0.0
        %1166 = vmatpush2.msra.mxu0 0.0
        %1167 = vmatprep.subr.mxu0 0.0
        %1168 = vmatpush2.msra.mxu0 0.0
        %1169 = vmatprep.subr.mxu0 0.0
        %1170 = vmatpush2.msra.mxu0 0.0
        %1171 = vmatprep.subr.mxu0 0.0
        %1172 = vmatpush2.msra.mxu0 0.0
        %1173 = vmatprep.mubr.f32.mxu0 0.0
        %1174 = vmatmul.mubr.f32.gmra.mxu0 %v1036
        %v1175 = vpop.f32.mrf.mxu0
        %v1176 = vadd.f32 %v1033, %v1175
        %v1177 = vpop.f32.mrf.mxu0
        %v1178 = vadd.f32 %v1033, %v1177
        %1179 = vdwg.mxu0
        %v1184 = vcombine.low %v1105, %v1107
        %v1185 = vcombine.low %v1176, %v1178
        %v1187 = vunpack.c.l.s4 1966171168
        %v1188 = vunpack.c.0.s8 %v1187
        %v1189 = vlaneseq
        %v1190 = vshrl.u32 %v1189, 7
        %v1191 = vsub.s32 %v1188, %v1190
        %v1192 = vrot.slane %v1184, %v1191
        %v1194 = vunpack.c.l.s4 1966171168
        %v1195 = vunpack.c.0.s8 %v1194
        %v1196 = vlaneseq
        %v1197 = vshrl.u32 %v1196, 7
        %v1198 = vsub.s32 %v1195, %v1197
        %v1199 = vrot.slane %v1185, %v1198
        %v1200 = vcombine.low %v1192, %v1199
        %v1202 = vunpack.c.l.s4 1966171168
        %v1203 = vunpack.c.0.s8 %v1202
        %v1204 = vlaneseq
        %v1205 = vshrl.u32 %v1204, 7
        %v1206 = vsub.s32 %v1203, %v1205
        %v1207 = vrot.slane %v1200, %v1206
        %v1209 = vlaneseq
        %vm1210 = vcmp.ge.s32.totalorder %v1209, 0
        %vm1211 = vcmp.lt.s32.totalorder %v1209, 512
        %vm1212 = vmand %vm1210, %vm1211
        %1213 = vst.msk [vmem:[%s347] sm:$0xf] %vm1212, %v1207
        %s1214 = sand.u32 %s193, 1
        %s1215 = scalar_lea.sflag [#allocation5], %s1214
        %s1216 = sand.u32 %s193, 1
        %s1217 = smul.addr %s1216, 4
        %s1218 = scalar_lea.vmem [#allocation9], %s1217
        // Predicated region
        $region61: #{tpu_custom_call.1} parent=47 // pred_check
          %p1219 = pneg %p203
        $region62: #{tpu_custom_call.1} parent=47 // pred_check_branch
          %1221 = sbr.rel (%p1219) target = $region64
        $region63: #{tpu_custom_call.1} parent=47 // pred_region
          %s1222 = smul.u32 4, %s28
          %s1224 = ssub.s32 64, 64
          %1225 = vsyncadd %s1215, %s1224
          %s1226 = smul.addr %s1222, 16
          %s1227 = scalar_lea.hbm %s7, %s1226
          %s1229 = sshll.u32 %s1218, 4
          %s1230 = int_to_ptr.vmem [resolvable:$true] %s1229
          %1232 = dma.vmem_to_hbm [thread:$0]  %s1230, 64, %s1227, %s1215
        $region64: #{tpu_custom_call.1} parent=47 // pred_fallthru
          _
      $region48: #{tpu_custom_call.1} parent=5 // pred_fallthru
        _
      %p1233 = scmp.le.s32.totalorder 2, %s23
      // Predicated region
      $region65: #{tpu_custom_call.1} parent=5 // pred_check
        %p1234 = pneg %p1233
      $region66: #{tpu_custom_call.1} parent=5 // pred_check_branch
        %1236 = sbr.rel (%p1234) target = $region68
      $region67: #{tpu_custom_call.1} parent=5 // pred_region
        %s1237 = ssub.s32 %s23, 2
        // Predicated region
        $region69: #{tpu_custom_call.1} parent=67 // pred_check
          %p1238 = pneg %p209
        $region70: #{tpu_custom_call.1} parent=67 // pred_check_branch
          %1240 = sbr.rel (%p1238) target = $region72
        $region71: #{tpu_custom_call.1} parent=67 // pred_region
          %s1241 = sand.u32 %s194, 1
          %s1242 = scalar_lea.sflag [#allocation5], %s1241
          %s1243 = sand.u32 %s194, 1
          %s1244 = smul.addr %s1243, 4
          %s1245 = scalar_lea.vmem [#allocation9], %s1244
          %1246 = dma.done %s1242, 64
        $region72: #{tpu_custom_call.1} parent=67 // pred_fallthru
          _
      $region68: #{tpu_custom_call.1} parent=5 // pred_fallthru
        _
    $region6: #{tpu_custom_call.1} parent=1 // loop_footer
      %s27 = sadd.s32 1, %s23
    $region7: #{tpu_custom_call.1} parent=1 // loop_footer_branch
      %22 = sbr.rel target = $region3
    $region8: #{tpu_custom_call.1} parent=1 // loop_exit
      _
    %1247 = vsyncpa [#allocation4], 1
    %s1248 = scalar_lea.sflag [#allocation4], 1
    %1249 = vsyncpa %s1248, 1
    %1250 = vsyncpa [#allocation7], 1
    %s1251 = scalar_lea.sflag [#allocation7], 1
    %1252 = vsyncpa %s1251, 1
    %1253 = vsyncpa [#allocation5], 1
    %s1254 = scalar_lea.sflag [#allocation5], 1
    %1255 = vsyncpa %s1254, 1

</llo_original>
